<compile_context>
chip_gen: v5e
topology: v5e:2x2
jax: 0.10.0
libtpu: 0.0.40
codegen_flags: <defaults>
</compile_context>

<pallas_src>
import math
import functools

import jax
import jax.numpy as jnp
from jax import lax
from jax.experimental import pallas as pl
from jax.experimental.pallas import tpu as pltpu


def _round_up(n, m):
    return ((n + m - 1) // m) * m


def _device_kind():
    try:
        return jax.devices()[0].device_kind.lower()
    except Exception:
        return ""


def _num_tensorcores():
    """Best-effort TensorCore count per chip (v7x = 2, v5e/v6e = 1)."""
    try:
        info = pltpu.get_tpu_info()
        for attr in ("num_cores", "tensorcore_count", "num_tensorcores", "core_count"):
            v = getattr(info, attr, None)
            if v:
                return int(v)
    except Exception:
        pass
    return 2 if "v7" in _device_kind() else 1


def _vmem_capacity_bytes():
    try:
        v = getattr(pltpu.get_tpu_info(), "vmem_capacity_bytes", None)
        if v:
            return int(v)
    except Exception:
        pass
    return (64 << 20) if "v7" in _device_kind() else (128 << 20)


# --------------------------------------------------------------------------
# Kernel 1 (parallel): linearIn + ReLU + x-side gate matmul, all timesteps.
# Compute in f32, store gates_x to HBM in bf16.
# --------------------------------------------------------------------------
def pre_kernel(x_ref, win_ref, bin_ref, wih_ref, bcomb_ref, gx_ref):
    x0 = jnp.dot(x_ref[...], win_ref[...], preferred_element_type=jnp.float32)
    x0 = jnp.maximum(x0 + bin_ref[...], 0.0)                       # (M, Hp)
    gx = (jnp.dot(x0, wih_ref[...], preferred_element_type=jnp.float32)
          + bcomb_ref[...])                                        # (M, 4Hp)
    gx_ref[...] = gx.astype(gx_ref.dtype)


# --------------------------------------------------------------------------
# Kernel 2 (sequential over time): h-side matmul + LSTM gate elementwise,
# with linearOut fused at chunk granularity.  Processes t_chunk timesteps per
# grid step; h/c carried in vregs inside the unrolled loop, persisted in VMEM
# scratch across chunks.  W_hh is loaded once per chunk (hoisted).
# --------------------------------------------------------------------------
def recurrent_kernel(gx_ref, whh_ref, wout_ref, bout_ref, y_ref,
                     h_sc, c_sc, hbuf_sc, *, t_chunk, tb, hp):
    # time axis is grid axis 1 (innermost); re-init h/c per batch tile.
    @pl.when(pl.program_id(1) == 0)
    def _():
        h_sc[...] = jnp.zeros_like(h_sc)
        c_sc[...] = jnp.zeros_like(c_sc)

    # Hoisted: W_hh read from VMEM once per chunk, closed over by the step body,
    # so the unrolled recurrence does not re-load the RHS every timestep.
    # TODO(synk): if bundle dumps still show per-step MXU weight pushes, drive the
    # MXU explicitly with pltpu.matmul_push_rhs / matmul_acc_lhs (accumulation
    # order changes slightly; needs re-validation).
    whh = whh_ref[...]

    def step(s, carry):
        h, c = carry
        g = gx_ref[s].astype(jnp.float32) + jnp.dot(
            h, whh, preferred_element_type=jnp.float32)             # (tb, 4Hp)
        # hp is a multiple of 128 -> whole-vreg slices (no XLU relayout).
        gate_i = jax.nn.sigmoid(g[:, 0 * hp:1 * hp])
        gate_f = jax.nn.sigmoid(g[:, 1 * hp:2 * hp])
        gate_g = jnp.tanh(g[:, 2 * hp:3 * hp])
        gate_o = jax.nn.sigmoid(g[:, 3 * hp:4 * hp])
        c = gate_f * c + gate_i * gate_g
        h = gate_o * jnp.tanh(c)
        hbuf_sc[pl.ds(s * tb, tb), :] = h        # stash h for the fused linearOut
        return (h, c)

    h_f, c_f = lax.fori_loop(0, t_chunk, step, (h_sc[...], c_sc[...]),
                             unroll=True)
    h_sc[...] = h_f
    c_sc[...] = c_f

    # Fused linearOut: one (t_chunk*tb, Hp) @ (Hp, ny) matmul per chunk, so the
    # full h slab never round-trips through HBM.
    y2d = (jnp.dot(hbuf_sc[...], wout_ref[...],
                   preferred_element_type=jnp.float32) + bout_ref[...])
    for s in range(t_chunk):                      # static, small
        y_ref[s] = y2d[s * tb:(s + 1) * tb, :]


def kuai_lstm_forward(x, params, *, t_chunk=8):
    """x: (nt, ngrid, nx) float32 -> (nt, ngrid, ny) float32 (eval-mode forward)."""
    nt, B, nx = x.shape
    H = params["w_hh"].shape[1]       # w_hh: (4H, H)
    ny = params["W_out"].shape[0]     # W_out: (ny, H)
    f32 = jnp.float32
    bf16 = jnp.bfloat16

    # --- device-derived budgets ---
    n_cores = _num_tensorcores()
    vmem_cap = _vmem_capacity_bytes()
    vmem_limit = max(24 << 20, min((vmem_cap * 3) // 4, 100 << 20))
    budget = int(vmem_limit * 0.85)          # headroom for compiler-internal scratch

    # --- padding to MXU / vreg friendly tiles ---
    Hp = _round_up(H, 128)            # hidden padded to lane multiple
    # 16-row granularity so bf16 gx blocks align with the (16,128) native tiling.
    B16 = _round_up(B, 16)

    # Batch split across TensorCores only on real 2-TC chips with >=128 rows/core;
    # splitting on single-TC v5e/v6e only serializes extra grid steps.
    n_split = 2 if (n_cores >= 2 and B16 >= 256) else 1
    tb = _round_up(-(-B16 // n_split), 16)

    t_chunk = max(1, min(t_chunk, nt))
    # vreg-pressure guard: the fori_loop carries h, c are (tb, Hp) f32 each.
    # TODO(synk): for very large tb*Hp, keep h/c fully in VMEM scratch instead of
    # carrying them; for now just shorten the unrolled chunk.
    if 2 * tb * Hp * 4 >= 128 * 1024:
        t_chunk = min(t_chunk, 4)

    def _rec_bytes(tc, tbb):
        fixed = 2 * Hp * 4 * Hp * 4 + 2 * Hp * ny * 4 + 2 * ny * 4     # whh, wout, bout (x2 buffers)
        blocks = 2 * tc * tbb * 4 * Hp * 2 + 2 * tc * tbb * ny * 4     # gx in (bf16), y out
        scratch = 2 * tbb * Hp * 4 + tc * tbb * Hp * 4                 # h, c, hbuf
        live = tbb * 4 * Hp * 4                                        # gate tile in flight
        return fixed + blocks + scratch + live

    # Shrink t_chunk first, then the batch tile, until the recurrence fits VMEM.
    while _rec_bytes(t_chunk, tb) > budget:
        if t_chunk > 1:
            t_chunk = max(1, t_chunk // 2)
        elif tb > 16:
            tb = _round_up(tb // 2, 16)
        else:
            # TODO(synk): tile the 4Hp axis of W_hh/W_ih for very large H.
            break

    n_b = -(-B16 // tb)
    Bp = n_b * tb
    ntp = _round_up(nt, t_chunk)
    n_t = ntp // t_chunk

    # --- weight prep (one-time JAX glue): transpose, gate-blocked zero-pad ---
    win_t = jnp.zeros((nx, Hp), f32).at[:, :H].set(params["W_in"].T)
    bin2 = jnp.zeros((1, Hp), f32).at[0, :H].set(params["b_in"])

    def gate_pad_T(w):                # (4H, H) -> (Hp, 4Hp), gate k in cols [k*Hp, k*Hp+H)
        wT = w.T.astype(f32)          # (H, 4H)
        out = jnp.zeros((Hp, 4 * Hp), f32)
        for k in range(4):
            out = out.at[:H, k * Hp:k * Hp + H].set(wT[:, k * H:(k + 1) * H])
        return out

    wih_t = gate_pad_T(params["w_ih"])
    whh_t = gate_pad_T(params["w_hh"])

    b_sum = params["b_ih"] + params["b_hh"]       # pre-combine biases
    bcomb = jnp.zeros((1, 4 * Hp), f32)
    for k in range(4):
        bcomb = bcomb.at[0, k * Hp:k * Hp + H].set(b_sum[k * H:(k + 1) * H])

    wout_t = jnp.zeros((Hp, ny), f32).at[:H, :].set(params["W_out"].T)
    bout2 = params["b_out"].reshape(1, ny).astype(f32)

    # --- pad inputs (padded rows / timesteps are sliced off at the end) ---
    xp = jnp.zeros((ntp, Bp, nx), f32).at[:nt, :B, :].set(x)
    nrows = ntp * Bp

    # Row block for the pre kernel: fixed target, rows padded up to a multiple of
    # it (no divisor search / no m_blk=8 fallback), shrunk only for VMEM.
    def _pre_bytes(mb):
        fixed = 2 * nx * Hp * 4 + 2 * Hp * 4 + 2 * Hp * 4 * Hp * 4 + 2 * 4 * Hp * 4
        blocks = 2 * mb * nx * 4 + 2 * mb * 4 * Hp * 2
        live = mb * Hp * 4 + mb * 4 * Hp * 4
        return fixed + blocks + live

    m_blk = min(512, _round_up(nrows, 16))
    while m_blk > 16 and _pre_bytes(m_blk) > budget:
        m_blk = _round_up(m_blk // 2, 16)
    nrows_p = _round_up(nrows, m_blk)

    x2 = jnp.zeros((nrows_p, nx), f32).at[:nrows, :].set(xp.reshape(nrows, nx))

    # ---- 1) gates_x for all timesteps (big parallel matmul, bf16 HBM store) ----
    gx2 = pl.pallas_call(
        pre_kernel,
        out_shape=jax.ShapeDtypeStruct((nrows_p, 4 * Hp), bf16),
        grid_spec=pltpu.PrefetchScalarGridSpec(
            num_scalar_prefetch=0,
            grid=(nrows_p // m_blk,),
            in_specs=[
                pl.BlockSpec((m_blk, nx), lambda i: (i, 0)),
                pl.BlockSpec((nx, Hp), lambda i: (0, 0)),
                pl.BlockSpec((1, Hp), lambda i: (0, 0)),
                pl.BlockSpec((Hp, 4 * Hp), lambda i: (0, 0)),
                pl.BlockSpec((1, 4 * Hp), lambda i: (0, 0)),
            ],
            out_specs=pl.BlockSpec((m_blk, 4 * Hp), lambda i: (i, 0)),
        ),
        compiler_params=pltpu.CompilerParams(
            dimension_semantics=("parallel",),
            vmem_limit_bytes=vmem_limit),
    )(x2, win_t, bin2, wih_t, bcomb)

    gx3 = gx2[:nrows].reshape(ntp, Bp, 4 * Hp)

    # ---- 2) serial recurrence (h @ W_hh + gate math) with fused linearOut ----
    flops = int(ntp * Bp * (2 * Hp * 4 * Hp + 10 * 4 * Hp + 2 * Hp * ny))
    transc = int(ntp * 5 * Bp * Hp)
    byts = int(ntp * Bp * 4 * Hp * 2 + ntp * Bp * ny * 4
               + Hp * 4 * Hp * 4 + Hp * ny * 4)

    y3 = pl.pallas_call(
        functools.partial(recurrent_kernel, t_chunk=t_chunk, tb=tb, hp=Hp),
        out_shape=jax.ShapeDtypeStruct((ntp, Bp, ny), f32),
        grid_spec=pltpu.PrefetchScalarGridSpec(
            num_scalar_prefetch=0,
            grid=(n_b, n_t),
            in_specs=[
                pl.BlockSpec((t_chunk, tb, 4 * Hp), lambda b, t: (t, b, 0)),
                pl.BlockSpec((Hp, 4 * Hp), lambda b, t: (0, 0)),
                pl.BlockSpec((Hp, ny), lambda b, t: (0, 0)),
                pl.BlockSpec((1, ny), lambda b, t: (0, 0)),
            ],
            out_specs=pl.BlockSpec((t_chunk, tb, ny), lambda b, t: (t, b, 0)),
            scratch_shapes=[
                pltpu.VMEM((tb, Hp), f32),                 # h carry across chunks
                pltpu.VMEM((tb, Hp), f32),                 # c carry across chunks
                pltpu.VMEM((t_chunk * tb, Hp), f32),       # h stash for fused linearOut
            ],
        ),
        compiler_params=pltpu.CompilerParams(
            dimension_semantics=("parallel", "arbitrary"),
            vmem_limit_bytes=vmem_limit),
        cost_estimate=pl.CostEstimate(flops=flops, transcendentals=transc,
                                      bytes_accessed=byts),
    )(gx3, whh_t, wout_t, bout2)

    return y3[:nt, :B, :]


def init_params(key, nx, ny, H):
    """Deterministic init matching the PyTorch module's parameter shapes."""
    ks = jax.random.split(key, 8)
    u = lambda k, shape, s: jax.random.uniform(k, shape, jnp.float32, -s, s)
    s_in = 1.0 / math.sqrt(nx)
    s_h = 1.0 / math.sqrt(H)
    return {
        "W_in": u(ks[0], (H, nx), s_in),       # linearIn.weight
        "b_in": u(ks[1], (H,), s_in),          # linearIn.bias
        "w_ih": u(ks[2], (4 * H, H), s_h),     # LSTM w_ih (input is H after linearIn)
        "w_hh": u(ks[3], (4 * H, H), s_h),     # LSTM w_hh
        "b_ih": u(ks[4], (4 * H,), s_h),
        "b_hh": u(ks[5], (4 * H,), s_h),
        "W_out": u(ks[6], (ny, H), s_h),       # linearOut.weight
        "b_out": u(ks[7], (ny,), s_h),         # linearOut.bias
    }


def reference_forward(x, params):
    """Pure-JAX reference (eval-mode KuaiLstm forward)."""
    nt, B, _ = x.shape
    H = params["w_hh"].shape[1]

    def step(carry, xt):
        h, c = carry
        x0 = jax.nn.relu(xt @ params["W_in"].T + params["b_in"])
        gates = (x0 @ params["w_ih"].T + params["b_ih"]
                 + h @ params["w_hh"].T + params["b_hh"])
        gi, gf, gg, go = jnp.split(gates, 4, axis=1)
        c1 = jax.nn.sigmoid(gf) * c + jax.nn.sigmoid(gi) * jnp.tanh(gg)
        h1 = jax.nn.sigmoid(go) * jnp.tanh(c1)
        y = h1 @ params["W_out"].T + params["b_out"]
        return (h1, c1), y

    init = (jnp.zeros((B, H), jnp.float32), jnp.zeros((B, H), jnp.float32))
    _, ys = jax.lax.scan(step, init, x)
    return ys


if __name__ == "__main__":
    # TODO(synk): training-mode DropMask dropout (dr=0.5, drW) is not implemented;
    # eval-mode forward (no dropout) is what KuaiLstm.forward computes at inference.
    nt, ngrid, nx = 8, 8, 4      # time steps, basins (batch), input features
    H, ny = 32, 2                # hidden states, output features

    key = jax.random.PRNGKey(0)
    kx, kp = jax.random.split(key)
    x = jax.random.normal(kx, (nt, ngrid, nx), dtype=jnp.float32)
    params = init_params(kp, nx, ny, H)

    out = jax.block_until_ready(kuai_lstm_forward(x, params))
    ref = jax.block_until_ready(reference_forward(x, params))

    assert out.shape == (nt, ngrid, ny)
    # gx is stored in bf16 (HBM only; compute stays f32) -> slightly looser tolerance.
    assert jnp.allclose(out, ref, atol=1e-2, rtol=1e-2), "mismatch vs JAX reference"

    print("KERNEL_OK")
</pallas_src>

<mosaic_0001>
module attributes {stable_mosaic.version = 11 : i64} {
  func.func @pre_kernel(%arg0: i32, %arg1: memref<128x4xf32, #tpu.memory_space<vmem>>, %arg2: memref<4x128xf32, #tpu.memory_space<vmem>>, %arg3: memref<1x128xf32, #tpu.memory_space<vmem>>, %arg4: memref<128x512xf32, #tpu.memory_space<vmem>>, %arg5: memref<1x512xf32, #tpu.memory_space<vmem>>, %arg6: memref<128x512xbf16, #tpu.memory_space<vmem>>) attributes {dimension_semantics = [#tpu.dimension_semantics<parallel>], iteration_bounds = array<i64: 1>, scalar_prefetch = 0 : i64, scratch_operands = 0 : i64, tpu.core_type = #tpu.core_type<tc>, window_params = [{transform_indices = @transform_0, window_bounds = array<i64: 128, 4>}, {pipeline_mode = #tpu.pipeline_mode<synchronous>, transform_indices = @transform_1, window_bounds = array<i64: 4, 128>}, {pipeline_mode = #tpu.pipeline_mode<synchronous>, transform_indices = @transform_2, window_bounds = array<i64: 1, 128>}, {pipeline_mode = #tpu.pipeline_mode<synchronous>, transform_indices = @transform_3, window_bounds = array<i64: 128, 512>}, {pipeline_mode = #tpu.pipeline_mode<synchronous>, transform_indices = @transform_4, window_bounds = array<i64: 1, 512>}, {transform_indices = @transform_5, window_bounds = array<i64: 128, 512>}]} {
    %c0 = arith.constant 0 : index
    %c0_0 = arith.constant 0 : index
    %0 = vector.load %arg1[%c0, %c0_0] : memref<128x4xf32, #tpu.memory_space<vmem>>, vector<128x4xf32>
    %c0_1 = arith.constant 0 : index
    %c0_2 = arith.constant 0 : index
    %1 = vector.load %arg2[%c0_1, %c0_2] : memref<4x128xf32, #tpu.memory_space<vmem>>, vector<4x128xf32>
    %cst = arith.constant dense<0.000000e+00> : vector<128x128xf32>
    %2 = tpu.matmul %0, %1, %cst {dimension_numbers = #tpu.dot_dimension_numbers<[1], [0], [0], [1], [0, 0, 1, 1], [], []>} : vector<128x4xf32>, vector<4x128xf32>, vector<128x128xf32> -> vector<128x128xf32>
    %c0_3 = arith.constant 0 : index
    %c0_4 = arith.constant 0 : index
    %3 = vector.load %arg3[%c0_3, %c0_4] : memref<1x128xf32, #tpu.memory_space<vmem>>, vector<1x128xf32>
    %4 = vector.broadcast %3 : vector<1x128xf32> to vector<128x128xf32>
    %5 = arith.addf %2, %4 : vector<128x128xf32>
    %cst_5 = arith.constant 0.000000e+00 : f32
    %6 = vector.broadcast %cst_5 : f32 to vector<128x128xf32>
    %7 = arith.maximumf %5, %6 : vector<128x128xf32>
    %c0_6 = arith.constant 0 : index
    %c0_7 = arith.constant 0 : index
    %8 = vector.load %arg4[%c0_6, %c0_7] : memref<128x512xf32, #tpu.memory_space<vmem>>, vector<128x512xf32>
    %cst_8 = arith.constant dense<0.000000e+00> : vector<128x512xf32>
    %9 = tpu.matmul %7, %8, %cst_8 {dimension_numbers = #tpu.dot_dimension_numbers<[1], [0], [0], [1], [0, 0, 1, 1], [], []>} : vector<128x128xf32>, vector<128x512xf32>, vector<128x512xf32> -> vector<128x512xf32>
    %c0_9 = arith.constant 0 : index
    %c0_10 = arith.constant 0 : index
    %10 = vector.load %arg5[%c0_9, %c0_10] : memref<1x512xf32, #tpu.memory_space<vmem>>, vector<1x512xf32>
    %11 = vector.broadcast %10 : vector<1x512xf32> to vector<128x512xf32>
    %12 = arith.addf %9, %11 : vector<128x512xf32>
    %13 = arith.truncf %12 : vector<128x512xf32> to vector<128x512xbf16>
    %c0_11 = arith.constant 0 : index
    %c0_12 = arith.constant 0 : index
    %14 = vector.load %arg6[%c0_11, %c0_12] : memref<128x512xbf16, #tpu.memory_space<vmem>>, vector<128x512xbf16>
    tpu.vector_store %arg6[%c0_11, %c0_12], %13 {strides = array<i32>} : memref<128x512xbf16, #tpu.memory_space<vmem>>, vector<128x512xbf16>,
    return
  }
  func.func @transform_0(%arg0: i32) -> (i32, i32) {
    %c0_i32 = arith.constant 0 : i32
    %c0_i32_0 = arith.constant 0 : i32
    return %arg0, %c0_i32 : i32, i32
  }
  func.func @transform_1(%arg0: i32) -> (i32, i32) {
    %c0_i32 = arith.constant 0 : i32
    %c0_i32_0 = arith.constant 0 : i32
    %c0_i32_1 = arith.constant 0 : i32
    return %c0_i32, %c0_i32_0 : i32, i32
  }
  func.func @transform_2(%arg0: i32) -> (i32, i32) {
    %c0_i32 = arith.constant 0 : i32
    %c0_i32_0 = arith.constant 0 : i32
    %c0_i32_1 = arith.constant 0 : i32
    return %c0_i32, %c0_i32_0 : i32, i32
  }
  func.func @transform_3(%arg0: i32) -> (i32, i32) {
    %c0_i32 = arith.constant 0 : i32
    %c0_i32_0 = arith.constant 0 : i32
    %c0_i32_1 = arith.constant 0 : i32
    return %c0_i32, %c0_i32_0 : i32, i32
  }
  func.func @transform_4(%arg0: i32) -> (i32, i32) {
    %c0_i32 = arith.constant 0 : i32
    %c0_i32_0 = arith.constant 0 : i32
    %c0_i32_1 = arith.constant 0 : i32
    return %c0_i32, %c0_i32_0 : i32, i32
  }
  func.func @transform_5(%arg0: i32) -> (i32, i32) {
    %c0_i32 = arith.constant 0 : i32
    %c0_i32_0 = arith.constant 0 : i32
    return %arg0, %c0_i32 : i32, i32
  }
}

</mosaic_0001>

<llo_original>
// kernel: tpu_custom_call.1
$region0: #{tpu_custom_call.1}
  #allocation0 [shape = 'u32[]', space=smem, size = 0x4, offset = 0x4, fixed_abs, tag = 'smem constant byte address 0x4 - core index']
  #allocation1 [shape = 'u32[72,128]{1,0:T(1,128)}', space=vmem, size = 0x9000, scoped, tag = 'internal scratch']
  %s0 = inlined_call_operand.vmem [shape: f32[128,4], index: 0, kind: input, shape index: {}]
  %s1 = inlined_call_operand.vmem [shape: f32[4,128], index: 1, kind: input, shape index: {}]
  %s2 = inlined_call_operand.vmem [shape: f32[1,128], index: 2, kind: input, shape index: {}]
  %s3 = inlined_call_operand.hbm [shape: f32[128,512], index: 3, kind: input, shape index: {}]
  %s4 = inlined_call_operand.vmem [shape: f32[1,512], index: 4, kind: input, shape index: {}]
  %s5 = inlined_call_operand.hbm [shape: bf16[128,512], index: 5, kind: output, shape index: {}]
  %s6 = sld [smem:[#allocation0]]
  $region34: #{tpu_custom_call.1} parent=0
    _
  %s8 = ssub.s32 1, %s6
  %s9 = scalar_select 0, %s8, %s6
  $region1: #{tpu_custom_call.1} parent=0
    #allocation2 [shape = 'u8[262144]{0}', space=vmem, size = 0x40000, scoped, tag = 'input window, operand 3, single buffered']
    #allocation3 [shape = 's32[1]{0}', space=sflag, size = 0x4, scoped, tag = 'scoped memory for tpu_custom_call.1']
    #allocation4 [shape = 's32[1]{0}', space=sflag, size = 0x4, scoped, tag = 'scoped memory for tpu_custom_call.1']
    #allocation5 [shape = 'u8[131072]{0}', space=vmem, size = 0x20000, scoped, tag = 'output window, operand 0, single buffered']
    %10 = vsyncpa [#allocation3], 0
    %11 = vsyncpa [#allocation4], 0
    // Predicated region
    $region2: #{tpu_custom_call.1} parent=1 // pred_check
      _
    $region3: #{tpu_custom_call.1} parent=1 // pred_check_branch
      %13 = sbr.rel (0) target = $region5
    $region4: #{tpu_custom_call.1} parent=1 // pred_region
      _
    $region5: #{tpu_custom_call.1} parent=1 // pred_fallthru
      _
    // Predicated region
    $region6: #{tpu_custom_call.1} parent=1 // pred_check
      _
    $region7: #{tpu_custom_call.1} parent=1 // pred_check_branch
      %15 = sbr.rel (0) target = $region9
    $region8: #{tpu_custom_call.1} parent=1 // pred_region
      _
    $region9: #{tpu_custom_call.1} parent=1 // pred_fallthru
      _
    // Predicated region
    $region10: #{tpu_custom_call.1} parent=1 // pred_check
      _
    $region11: #{tpu_custom_call.1} parent=1 // pred_check_branch
      %17 = sbr.rel (0) target = $region13
    $region12: #{tpu_custom_call.1} parent=1 // pred_region
      _
    $region13: #{tpu_custom_call.1} parent=1 // pred_fallthru
      _
    // Predicated region
    $region14: #{tpu_custom_call.1} parent=1 // pred_check
      _
    $region15: #{tpu_custom_call.1} parent=1 // pred_check_branch
      %19 = sbr.rel (0) target = $region17
    $region16: #{tpu_custom_call.1} parent=1 // pred_region
      %21 = vsyncadd [#allocation3], 0
      %s22 = sshll.u32 %s3, 4
      %s23 = int_to_ptr.hbm [resolvable:$true] %s22
      %s24 = sshll.u32 [#allocation2], 4
      %s25 = int_to_ptr.vmem [resolvable:$true] %s24
      %30 = dma.hbm_to_vmem [thread:$0]  %s23, 8192, %s25, [#allocation3], 512, 512, 32
    $region17: #{tpu_custom_call.1} parent=1 // pred_fallthru
      _
    // Predicated region
    $region18: #{tpu_custom_call.1} parent=1 // pred_check
      _
    $region19: #{tpu_custom_call.1} parent=1 // pred_check_branch
      %32 = sbr.rel (0) target = $region21
    $region20: #{tpu_custom_call.1} parent=1 // pred_region
      _
    $region21: #{tpu_custom_call.1} parent=1 // pred_fallthru
      _
    // Predicated region
    $region22: #{tpu_custom_call.1} parent=1 // pred_check
      _
    $region23: #{tpu_custom_call.1} parent=1 // pred_check_branch
      %34 = sbr.rel (0) target = $region25
    $region24: #{tpu_custom_call.1} parent=1 // pred_region
      %36 = dma.done [#allocation3], 8192
    $region25: #{tpu_custom_call.1} parent=1 // pred_fallthru
      _
    %v37 = vld [vmem:[%s0] sm:$0xff]
    %v38 = vld [vmem:[%s0 + $0x8] sm:$0xff]
    %v39 = vld [vmem:[%s0 + $0x10] sm:$0xff]
    %v40 = vld [vmem:[%s0 + $0x18] sm:$0xff]
    %v41 = vld [vmem:[%s0 + $0x20] sm:$0xff]
    %v42 = vld [vmem:[%s0 + $0x28] sm:$0xff]
    %v43 = vld [vmem:[%s0 + $0x30] sm:$0xff]
    %v44 = vld [vmem:[%s0 + $0x38] sm:$0xff]
    %v45 = vld [vmem:[%s0 + $0x40] sm:$0xff]
    %v46 = vld [vmem:[%s0 + $0x48] sm:$0xff]
    %v47 = vld [vmem:[%s0 + $0x50] sm:$0xff]
    %v48 = vld [vmem:[%s0 + $0x58] sm:$0xff]
    %v49 = vld [vmem:[%s0 + $0x60] sm:$0xff]
    %v50 = vld [vmem:[%s0 + $0x68] sm:$0xff]
    %v51 = vld [vmem:[%s0 + $0x70] sm:$0xff]
    %v52 = vld [vmem:[%s0 + $0x78] sm:$0xff]
    %v53 = vld [vmem:[%s1] sm:$0xf]
    %v54 = vld [vmem:[%s2] sm:$0x1]
    %v56 = vperm.slane %v54, 0
    %vm58 = vcmask 31744
    %v60 = vsel %vm58, %v37, 0
    %v63 = vsel %vm58, %v38, 0
    %v66 = vsel %vm58, %v39, 0
    %v69 = vsel %vm58, %v40, 0
    %v72 = vsel %vm58, %v41, 0
    %v75 = vsel %vm58, %v42, 0
    %v78 = vsel %vm58, %v43, 0
    %v81 = vsel %vm58, %v44, 0
    %v84 = vsel %vm58, %v45, 0
    %v87 = vsel %vm58, %v46, 0
    %v90 = vsel %vm58, %v47, 0
    %v93 = vsel %vm58, %v48, 0
    %v96 = vsel %vm58, %v49, 0
    %v99 = vsel %vm58, %v50, 0
    %v102 = vsel %vm58, %v51, 0
    %v105 = vsel %vm58, %v52, 0
    %vm107 = vcmask 1043456
    %v109 = vsel %vm107, %v53, 0
    %111 = vmatpush.msra.mxu0 0.0
    %112 = vmatpush.msra.mxu0 0.0
    %113 = vmatpush.msra.mxu0 0.0
    %114 = vmatpush.msra.mxu0 0.0
    %115 = vmatpush.msra.mxu0 0.0
    %116 = vmatpush.msra.mxu0 0.0
    %117 = vmatpush.msra.mxu0 0.0
    %118 = vmatpush.msra.mxu0 0.0
    %119 = vmatpush.msra.mxu0 0.0
    %120 = vmatpush.msra.mxu0 0.0
    %121 = vmatpush.msra.mxu0 0.0
    %122 = vmatpush.msra.mxu0 0.0
    %123 = vmatpush.msra.mxu0 0.0
    %124 = vmatpush.msra.mxu0 0.0
    %125 = vmatpush.msra.mxu0 0.0
    %126 = vmatpush.msra.mxu0 %v109
    %127 = vmatmul.f32.gmra.mxu0 %v60
    %v128 = vpop.f32.mrf.mxu0
    %v129 = vadd.f32 %v56, %v128
    %130 = vmatmul.f32.gmra.mxu0 %v63
    %v131 = vpop.f32.mrf.mxu0
    %v132 = vadd.f32 %v56, %v131
    %133 = vmatmul.f32.gmra.mxu0 %v66
    %v134 = vpop.f32.mrf.mxu0
    %v135 = vadd.f32 %v56, %v134
    %136 = vmatmul.f32.gmra.mxu0 %v69
    %v137 = vpop.f32.mrf.mxu0
    %v138 = vadd.f32 %v56, %v137
    %139 = vmatmul.f32.gmra.mxu0 %v72
    %v140 = vpop.f32.mrf.mxu0
    %v141 = vadd.f32 %v56, %v140
    %142 = vmatmul.f32.gmra.mxu0 %v75
    %v143 = vpop.f32.mrf.mxu0
    %v144 = vadd.f32 %v56, %v143
    %145 = vmatmul.f32.gmra.mxu0 %v78
    %v146 = vpop.f32.mrf.mxu0
    %v147 = vadd.f32 %v56, %v146
    %148 = vmatmul.f32.gmra.mxu0 %v81
    %v149 = vpop.f32.mrf.mxu0
    %v150 = vadd.f32 %v56, %v149
    %151 = vmatmul.f32.gmra.mxu0 %v84
    %v152 = vpop.f32.mrf.mxu0
    %v153 = vadd.f32 %v56, %v152
    %154 = vmatmul.f32.gmra.mxu0 %v87
    %v155 = vpop.f32.mrf.mxu0
    %v156 = vadd.f32 %v56, %v155
    %157 = vmatmul.f32.gmra.mxu0 %v90
    %v158 = vpop.f32.mrf.mxu0
    %v159 = vadd.f32 %v56, %v158
    %160 = vmatmul.f32.gmra.mxu0 %v93
    %v161 = vpop.f32.mrf.mxu0
    %v162 = vadd.f32 %v56, %v161
    %163 = vmatmul.f32.gmra.mxu0 %v96
    %v164 = vpop.f32.mrf.mxu0
    %v165 = vadd.f32 %v56, %v164
    %166 = vmatmul.f32.gmra.mxu0 %v99
    %v167 = vpop.f32.mrf.mxu0
    %v168 = vadd.f32 %v56, %v167
    %169 = vmatmul.f32.gmra.mxu0 %v102
    %v170 = vpop.f32.mrf.mxu0
    %v171 = vadd.f32 %v56, %v170
    %172 = vmatmul.f32.gmra.mxu0 %v105
    %v173 = vpop.f32.mrf.mxu0
    %v174 = vadd.f32 %v56, %v173
    %175 = vdwg.mxu0
    %v176 = vmax.f32 %v129, 0.0
    %v177 = vmax.f32 %v132, 0.0
    %v178 = vmax.f32 %v135, 0.0
    %v179 = vmax.f32 %v138, 0.0
    %v180 = vmax.f32 %v141, 0.0
    %v181 = vmax.f32 %v144, 0.0
    %v182 = vmax.f32 %v147, 0.0
    %v183 = vmax.f32 %v150, 0.0
    %v184 = vmax.f32 %v153, 0.0
    %v185 = vmax.f32 %v156, 0.0
    %v186 = vmax.f32 %v159, 0.0
    %v187 = vmax.f32 %v162, 0.0
    %v188 = vmax.f32 %v165, 0.0
    %v189 = vmax.f32 %v168, 0.0
    %v190 = vmax.f32 %v171, 0.0
    %v191 = vmax.f32 %v174, 0.0
    %v192 = vld [vmem:[#allocation2] sm:$0xff]
    %v193 = vld [vmem:[#allocation2 + $0x8] sm:$0xff]
    %v194 = vld [vmem:[#allocation2 + $0x10] sm:$0xff]
    %v195 = vld [vmem:[#allocation2 + $0x18] sm:$0xff]
    %v196 = vld [vmem:[#allocation2 + $0x20] sm:$0xff]
    %v197 = vld [vmem:[#allocation2 + $0x28] sm:$0xff]
    %v198 = vld [vmem:[#allocation2 + $0x30] sm:$0xff]
    %v199 = vld [vmem:[#allocation2 + $0x38] sm:$0xff]
    %v200 = vld [vmem:[#allocation2 + $0x40] sm:$0xff]
    %v201 = vld [vmem:[#allocation2 + $0x48] sm:$0xff]
    %v202 = vld [vmem:[#allocation2 + $0x50] sm:$0xff]
    %v203 = vld [vmem:[#allocation2 + $0x58] sm:$0xff]
    %v204 = vld [vmem:[#allocation2 + $0x60] sm:$0xff]
    %v205 = vld [vmem:[#allocation2 + $0x68] sm:$0xff]
    %v206 = vld [vmem:[#allocation2 + $0x70] sm:$0xff]
    %v207 = vld [vmem:[#allocation2 + $0x78] sm:$0xff]
    %v208 = vld [vmem:[#allocation2 + $0x80] sm:$0xff]
    %v209 = vld [vmem:[#allocation2 + $0x88] sm:$0xff]
    %v210 = vld [vmem:[#allocation2 + $0x90] sm:$0xff]
    %v211 = vld [vmem:[#allocation2 + $0x98] sm:$0xff]
    %v212 = vld [vmem:[#allocation2 + $0xa0] sm:$0xff]
    %v213 = vld [vmem:[#allocation2 + $0xa8] sm:$0xff]
    %v214 = vld [vmem:[#allocation2 + $0xb0] sm:$0xff]
    %v215 = vld [vmem:[#allocation2 + $0xb8] sm:$0xff]
    %v216 = vld [vmem:[#allocation2 + $0xc0] sm:$0xff]
    %v217 = vld [vmem:[#allocation2 + $0xc8] sm:$0xff]
    %v218 = vld [vmem:[#allocation2 + $0xd0] sm:$0xff]
    %v219 = vld [vmem:[#allocation2 + $0xd8] sm:$0xff]
    %v220 = vld [vmem:[#allocation2 + $0xe0] sm:$0xff]
    %v221 = vld [vmem:[#allocation2 + $0xe8] sm:$0xff]
    %v222 = vld [vmem:[#allocation2 + $0xf0] sm:$0xff]
    %v223 = vld [vmem:[#allocation2 + $0xf8] sm:$0xff]
    %v224 = vld [vmem:[#allocation2 + $0x100] sm:$0xff]
    %v225 = vld [vmem:[#allocation2 + $0x108] sm:$0xff]
    %v226 = vld [vmem:[#allocation2 + $0x110] sm:$0xff]
    %v227 = vld [vmem:[#allocation2 + $0x118] sm:$0xff]
    %v228 = vld [vmem:[#allocation2 + $0x120] sm:$0xff]
    %v229 = vld [vmem:[#allocation2 + $0x128] sm:$0xff]
    %v230 = vld [vmem:[#allocation2 + $0x130] sm:$0xff]
    %v231 = vld [vmem:[#allocation2 + $0x138] sm:$0xff]
    %v232 = vld [vmem:[#allocation2 + $0x140] sm:$0xff]
    %v233 = vld [vmem:[#allocation2 + $0x148] sm:$0xff]
    %v234 = vld [vmem:[#allocation2 + $0x150] sm:$0xff]
    %v235 = vld [vmem:[#allocation2 + $0x158] sm:$0xff]
    %v236 = vld [vmem:[#allocation2 + $0x160] sm:$0xff]
    %v237 = vld [vmem:[#allocation2 + $0x168] sm:$0xff]
    %v238 = vld [vmem:[#allocation2 + $0x170] sm:$0xff]
    %v239 = vld [vmem:[#allocation2 + $0x178] sm:$0xff]
    %v240 = vld [vmem:[#allocation2 + $0x180] sm:$0xff]
    %v241 = vld [vmem:[#allocation2 + $0x188] sm:$0xff]
    %v242 = vld [vmem:[#allocation2 + $0x190] sm:$0xff]
    %v243 = vld [vmem:[#allocation2 + $0x198] sm:$0xff]
    %v244 = vld [vmem:[#allocation2 + $0x1a0] sm:$0xff]
    %v245 = vld [vmem:[#allocation2 + $0x1a8] sm:$0xff]
    %v246 = vld [vmem:[#allocation2 + $0x1b0] sm:$0xff]
    %v247 = vld [vmem:[#allocation2 + $0x1b8] sm:$0xff]
    %v248 = vld [vmem:[#allocation2 + $0x1c0] sm:$0xff]
    %v249 = vld [vmem:[#allocation2 + $0x1c8] sm:$0xff]
    %v250 = vld [vmem:[#allocation2 + $0x1d0] sm:$0xff]
    %v251 = vld [vmem:[#allocation2 + $0x1d8] sm:$0xff]
    %v252 = vld [vmem:[#allocation2 + $0x1e0] sm:$0xff]
    %v253 = vld [vmem:[#allocation2 + $0x1e8] sm:$0xff]
    %v254 = vld [vmem:[#allocation2 + $0x1f0] sm:$0xff]
    %v255 = vld [vmem:[#allocation2 + $0x1f8] sm:$0xff]
    %v256 = vld [vmem:[%s4] sm:$0xf]
    %v258 = vperm.slane %v256, 0
    %v259 = vperm.slane %v256, 1
    %v260 = vperm.slane %v256, 2
    %v261 = vperm.slane %v256, 3
    %266 = vmatpush.msra.mxu0 %v252
    %267 = vmatpush.msra.mxu0 %v248
    %268 = vmatpush.msra.mxu0 %v244
    %269 = vmatpush.msra.mxu0 %v240
    %270 = vmatpush.msra.mxu0 %v236
    %271 = vmatpush.msra.mxu0 %v232
    %272 = vmatpush.msra.mxu0 %v228
    %273 = vmatpush.msra.mxu0 %v224
    %274 = vmatpush.msra.mxu0 %v220
    %275 = vmatpush.msra.mxu0 %v216
    %276 = vmatpush.msra.mxu0 %v212
    %277 = vmatpush.msra.mxu0 %v208
    %278 = vmatpush.msra.mxu0 %v204
    %279 = vmatpush.msra.mxu0 %v200
    %280 = vmatpush.msra.mxu0 %v196
    %281 = vmatpush.msra.mxu0 %v192
    %282 = vmatmul.f32.gmra.mxu0 %v176
    %v283 = vpop.f32.mrf.mxu0
    %v284 = vadd.f32 %v258, %v283
    %285 = vmatmul.f32.gmra.mxu0 %v177
    %v286 = vpop.f32.mrf.mxu0
    %v287 = vadd.f32 %v258, %v286
    %288 = vmatmul.f32.gmra.mxu0 %v178
    %v289 = vpop.f32.mrf.mxu0
    %v290 = vadd.f32 %v258, %v289
    %291 = vmatmul.f32.gmra.mxu0 %v179
    %v292 = vpop.f32.mrf.mxu0
    %v293 = vadd.f32 %v258, %v292
    %294 = vmatmul.f32.gmra.mxu0 %v180
    %v295 = vpop.f32.mrf.mxu0
    %v296 = vadd.f32 %v258, %v295
    %297 = vmatmul.f32.gmra.mxu0 %v181
    %v298 = vpop.f32.mrf.mxu0
    %v299 = vadd.f32 %v258, %v298
    %300 = vmatmul.f32.gmra.mxu0 %v182
    %v301 = vpop.f32.mrf.mxu0
    %v302 = vadd.f32 %v258, %v301
    %303 = vmatmul.f32.gmra.mxu0 %v183
    %v304 = vpop.f32.mrf.mxu0
    %v305 = vadd.f32 %v258, %v304
    %306 = vmatmul.f32.gmra.mxu0 %v184
    %v307 = vpop.f32.mrf.mxu0
    %v308 = vadd.f32 %v258, %v307
    %309 = vmatmul.f32.gmra.mxu0 %v185
    %v310 = vpop.f32.mrf.mxu0
    %v311 = vadd.f32 %v258, %v310
    %312 = vmatmul.f32.gmra.mxu0 %v186
    %v313 = vpop.f32.mrf.mxu0
    %v314 = vadd.f32 %v258, %v313
    %315 = vmatmul.f32.gmra.mxu0 %v187
    %v316 = vpop.f32.mrf.mxu0
    %v317 = vadd.f32 %v258, %v316
    %318 = vmatmul.f32.gmra.mxu0 %v188
    %v319 = vpop.f32.mrf.mxu0
    %v320 = vadd.f32 %v258, %v319
    %321 = vmatmul.f32.gmra.mxu0 %v189
    %v322 = vpop.f32.mrf.mxu0
    %v323 = vadd.f32 %v258, %v322
    %324 = vmatmul.f32.gmra.mxu0 %v190
    %v325 = vpop.f32.mrf.mxu0
    %v326 = vadd.f32 %v258, %v325
    %327 = vmatmul.f32.gmra.mxu0 %v191
    %v328 = vpop.f32.mrf.mxu0
    %v329 = vadd.f32 %v258, %v328
    %330 = vdwg.mxu0
    %331 = vmatpush.msra.mxu0 %v253
    %332 = vmatpush.msra.mxu0 %v249
    %333 = vmatpush.msra.mxu0 %v245
    %334 = vmatpush.msra.mxu0 %v241
    %335 = vmatpush.msra.mxu0 %v237
    %336 = vmatpush.msra.mxu0 %v233
    %337 = vmatpush.msra.mxu0 %v229
    %338 = vmatpush.msra.mxu0 %v225
    %339 = vmatpush.msra.mxu0 %v221
    %340 = vmatpush.msra.mxu0 %v217
    %341 = vmatpush.msra.mxu0 %v213
    %342 = vmatpush.msra.mxu0 %v209
    %343 = vmatpush.msra.mxu0 %v205
    %344 = vmatpush.msra.mxu0 %v201
    %345 = vmatpush.msra.mxu0 %v197
    %346 = vmatpush.msra.mxu0 %v193
    %347 = vmatmul.f32.gmra.mxu0 %v176
    %v348 = vpop.f32.mrf.mxu0
    %v349 = vadd.f32 %v259, %v348
    %350 = vmatmul.f32.gmra.mxu0 %v177
    %v351 = vpop.f32.mrf.mxu0
    %v352 = vadd.f32 %v259, %v351
    %353 = vmatmul.f32.gmra.mxu0 %v178
    %v354 = vpop.f32.mrf.mxu0
    %v355 = vadd.f32 %v259, %v354
    %356 = vmatmul.f32.gmra.mxu0 %v179
    %v357 = vpop.f32.mrf.mxu0
    %v358 = vadd.f32 %v259, %v357
    %359 = vmatmul.f32.gmra.mxu0 %v180
    %v360 = vpop.f32.mrf.mxu0
    %v361 = vadd.f32 %v259, %v360
    %362 = vmatmul.f32.gmra.mxu0 %v181
    %v363 = vpop.f32.mrf.mxu0
    %v364 = vadd.f32 %v259, %v363
    %365 = vmatmul.f32.gmra.mxu0 %v182
    %v366 = vpop.f32.mrf.mxu0
    %v367 = vadd.f32 %v259, %v366
    %368 = vmatmul.f32.gmra.mxu0 %v183
    %v369 = vpop.f32.mrf.mxu0
    %v370 = vadd.f32 %v259, %v369
    %371 = vmatmul.f32.gmra.mxu0 %v184
    %v372 = vpop.f32.mrf.mxu0
    %v373 = vadd.f32 %v259, %v372
    %374 = vmatmul.f32.gmra.mxu0 %v185
    %v375 = vpop.f32.mrf.mxu0
    %v376 = vadd.f32 %v259, %v375
    %377 = vmatmul.f32.gmra.mxu0 %v186
    %v378 = vpop.f32.mrf.mxu0
    %v379 = vadd.f32 %v259, %v378
    %380 = vmatmul.f32.gmra.mxu0 %v187
    %v381 = vpop.f32.mrf.mxu0
    %v382 = vadd.f32 %v259, %v381
    %383 = vmatmul.f32.gmra.mxu0 %v188
    %v384 = vpop.f32.mrf.mxu0
    %v385 = vadd.f32 %v259, %v384
    %386 = vmatmul.f32.gmra.mxu0 %v189
    %v387 = vpop.f32.mrf.mxu0
    %v388 = vadd.f32 %v259, %v387
    %389 = vmatmul.f32.gmra.mxu0 %v190
    %v390 = vpop.f32.mrf.mxu0
    %v391 = vadd.f32 %v259, %v390
    %392 = vmatmul.f32.gmra.mxu0 %v191
    %v393 = vpop.f32.mrf.mxu0
    %v394 = vadd.f32 %v259, %v393
    %395 = vdwg.mxu0
    %396 = vmatpush.msra.mxu0 %v254
    %397 = vmatpush.msra.mxu0 %v250
    %398 = vmatpush.msra.mxu0 %v246
    %399 = vmatpush.msra.mxu0 %v242
    %400 = vmatpush.msra.mxu0 %v238
    %401 = vmatpush.msra.mxu0 %v234
    %402 = vmatpush.msra.mxu0 %v230
    %403 = vmatpush.msra.mxu0 %v226
    %404 = vmatpush.msra.mxu0 %v222
    %405 = vmatpush.msra.mxu0 %v218
    %406 = vmatpush.msra.mxu0 %v214
    %407 = vmatpush.msra.mxu0 %v210
    %408 = vmatpush.msra.mxu0 %v206
    %409 = vmatpush.msra.mxu0 %v202
    %410 = vmatpush.msra.mxu0 %v198
    %411 = vmatpush.msra.mxu0 %v194
    %412 = vmatmul.f32.gmra.mxu0 %v176
    %v413 = vpop.f32.mrf.mxu0
    %v414 = vadd.f32 %v260, %v413
    %415 = vmatmul.f32.gmra.mxu0 %v177
    %v416 = vpop.f32.mrf.mxu0
    %v417 = vadd.f32 %v260, %v416
    %418 = vmatmul.f32.gmra.mxu0 %v178
    %v419 = vpop.f32.mrf.mxu0
    %v420 = vadd.f32 %v260, %v419
    %421 = vmatmul.f32.gmra.mxu0 %v179
    %v422 = vpop.f32.mrf.mxu0
    %v423 = vadd.f32 %v260, %v422
    %424 = vmatmul.f32.gmra.mxu0 %v180
    %v425 = vpop.f32.mrf.mxu0
    %v426 = vadd.f32 %v260, %v425
    %427 = vmatmul.f32.gmra.mxu0 %v181
    %v428 = vpop.f32.mrf.mxu0
    %v429 = vadd.f32 %v260, %v428
    %430 = vmatmul.f32.gmra.mxu0 %v182
    %v431 = vpop.f32.mrf.mxu0
    %v432 = vadd.f32 %v260, %v431
    %433 = vmatmul.f32.gmra.mxu0 %v183
    %v434 = vpop.f32.mrf.mxu0
    %v435 = vadd.f32 %v260, %v434
    %436 = vmatmul.f32.gmra.mxu0 %v184
    %v437 = vpop.f32.mrf.mxu0
    %v438 = vadd.f32 %v260, %v437
    %439 = vmatmul.f32.gmra.mxu0 %v185
    %v440 = vpop.f32.mrf.mxu0
    %v441 = vadd.f32 %v260, %v440
    %442 = vmatmul.f32.gmra.mxu0 %v186
    %v443 = vpop.f32.mrf.mxu0
    %v444 = vadd.f32 %v260, %v443
    %445 = vmatmul.f32.gmra.mxu0 %v187
    %v446 = vpop.f32.mrf.mxu0
    %v447 = vadd.f32 %v260, %v446
    %448 = vmatmul.f32.gmra.mxu0 %v188
    %v449 = vpop.f32.mrf.mxu0
    %v450 = vadd.f32 %v260, %v449
    %451 = vmatmul.f32.gmra.mxu0 %v189
    %v452 = vpop.f32.mrf.mxu0
    %v453 = vadd.f32 %v260, %v452
    %454 = vmatmul.f32.gmra.mxu0 %v190
    %v455 = vpop.f32.mrf.mxu0
    %v456 = vadd.f32 %v260, %v455
    %457 = vmatmul.f32.gmra.mxu0 %v191
    %v458 = vpop.f32.mrf.mxu0
    %v459 = vadd.f32 %v260, %v458
    %460 = vdwg.mxu0
    %461 = vmatpush.msra.mxu0 %v255
    %462 = vmatpush.msra.mxu0 %v251
    %463 = vmatpush.msra.mxu0 %v247
    %464 = vmatpush.msra.mxu0 %v243
    %465 = vmatpush.msra.mxu0 %v239
    %466 = vmatpush.msra.mxu0 %v235
    %467 = vmatpush.msra.mxu0 %v231
    %468 = vmatpush.msra.mxu0 %v227
    %469 = vmatpush.msra.mxu0 %v223
    %470 = vmatpush.msra.mxu0 %v219
    %471 = vmatpush.msra.mxu0 %v215
    %472 = vmatpush.msra.mxu0 %v211
    %473 = vmatpush.msra.mxu0 %v207
    %474 = vmatpush.msra.mxu0 %v203
    %475 = vmatpush.msra.mxu0 %v199
    %476 = vmatpush.msra.mxu0 %v195
    %477 = vmatmul.f32.gmra.mxu0 %v176
    %v478 = vpop.f32.mrf.mxu0
    %v479 = vadd.f32 %v261, %v478
    %480 = vmatmul.f32.gmra.mxu0 %v177
    %v481 = vpop.f32.mrf.mxu0
    %v482 = vadd.f32 %v261, %v481
    %483 = vmatmul.f32.gmra.mxu0 %v178
    %v484 = vpop.f32.mrf.mxu0
    %v485 = vadd.f32 %v261, %v484
    %486 = vmatmul.f32.gmra.mxu0 %v179
    %v487 = vpop.f32.mrf.mxu0
    %v488 = vadd.f32 %v261, %v487
    %489 = vmatmul.f32.gmra.mxu0 %v180
    %v490 = vpop.f32.mrf.mxu0
    %v491 = vadd.f32 %v261, %v490
    %492 = vmatmul.f32.gmra.mxu0 %v181
    %v493 = vpop.f32.mrf.mxu0
    %v494 = vadd.f32 %v261, %v493
    %495 = vmatmul.f32.gmra.mxu0 %v182
    %v496 = vpop.f32.mrf.mxu0
    %v497 = vadd.f32 %v261, %v496
    %498 = vmatmul.f32.gmra.mxu0 %v183
    %v499 = vpop.f32.mrf.mxu0
    %v500 = vadd.f32 %v261, %v499
    %501 = vmatmul.f32.gmra.mxu0 %v184
    %v502 = vpop.f32.mrf.mxu0
    %v503 = vadd.f32 %v261, %v502
    %504 = vmatmul.f32.gmra.mxu0 %v185
    %v505 = vpop.f32.mrf.mxu0
    %v506 = vadd.f32 %v261, %v505
    %507 = vmatmul.f32.gmra.mxu0 %v186
    %v508 = vpop.f32.mrf.mxu0
    %v509 = vadd.f32 %v261, %v508
    %510 = vmatmul.f32.gmra.mxu0 %v187
    %v511 = vpop.f32.mrf.mxu0
    %v512 = vadd.f32 %v261, %v511
    %513 = vmatmul.f32.gmra.mxu0 %v188
    %v514 = vpop.f32.mrf.mxu0
    %v515 = vadd.f32 %v261, %v514
    %516 = vmatmul.f32.gmra.mxu0 %v189
    %v517 = vpop.f32.mrf.mxu0
    %v518 = vadd.f32 %v261, %v517
    %519 = vmatmul.f32.gmra.mxu0 %v190
    %v520 = vpop.f32.mrf.mxu0
    %v521 = vadd.f32 %v261, %v520
    %522 = vmatmul.f32.gmra.mxu0 %v191
    %v523 = vpop.f32.mrf.mxu0
    %v524 = vadd.f32 %v261, %v523
    %525 = vdwg.mxu0
    %v526 = vpack.c.bf16 %v349, %v284
    %v527 = vpack.c.bf16 %v479, %v414
    %v528 = vpack.c.bf16 %v352, %v287
    %v529 = vpack.c.bf16 %v482, %v417
    %v530 = vpack.c.bf16 %v355, %v290
    %v531 = vpack.c.bf16 %v485, %v420
    %v532 = vpack.c.bf16 %v358, %v293
    %v533 = vpack.c.bf16 %v488, %v423
    %v534 = vpack.c.bf16 %v361, %v296
    %v535 = vpack.c.bf16 %v491, %v426
    %v536 = vpack.c.bf16 %v364, %v299
    %v537 = vpack.c.bf16 %v494, %v429
    %v538 = vpack.c.bf16 %v367, %v302
    %v539 = vpack.c.bf16 %v497, %v432
    %v540 = vpack.c.bf16 %v370, %v305
    %v541 = vpack.c.bf16 %v500, %v435
    %v542 = vpack.c.bf16 %v373, %v308
    %v543 = vpack.c.bf16 %v503, %v438
    %v544 = vpack.c.bf16 %v376, %v311
    %v545 = vpack.c.bf16 %v506, %v441
    %v546 = vpack.c.bf16 %v379, %v314
    %v547 = vpack.c.bf16 %v509, %v444
    %v548 = vpack.c.bf16 %v382, %v317
    %v549 = vpack.c.bf16 %v512, %v447
    %v550 = vpack.c.bf16 %v385, %v320
    %v551 = vpack.c.bf16 %v515, %v450
    %v552 = vpack.c.bf16 %v388, %v323
    %v553 = vpack.c.bf16 %v518, %v453
    %v554 = vpack.c.bf16 %v391, %v326
    %v555 = vpack.c.bf16 %v521, %v456
    %v556 = vpack.c.bf16 %v394, %v329
    %v557 = vpack.c.bf16 %v524, %v459
    %558 = vst [vmem:[#allocation5] sm:$0xff] %v526
    %559 = vst [vmem:[#allocation5 + $0x8] sm:$0xff] %v527
    %560 = vst [vmem:[#allocation5 + $0x10] sm:$0xff] %v528
    %561 = vst [vmem:[#allocation5 + $0x18] sm:$0xff] %v529
    %562 = vst [vmem:[#allocation5 + $0x20] sm:$0xff] %v530
    %563 = vst [vmem:[#allocation5 + $0x28] sm:$0xff] %v531
    %564 = vst [vmem:[#allocation5 + $0x30] sm:$0xff] %v532
    %565 = vst [vmem:[#allocation5 + $0x38] sm:$0xff] %v533
    %566 = vst [vmem:[#allocation5 + $0x40] sm:$0xff] %v534
    %567 = vst [vmem:[#allocation5 + $0x48] sm:$0xff] %v535
    %568 = vst [vmem:[#allocation5 + $0x50] sm:$0xff] %v536
    %569 = vst [vmem:[#allocation5 + $0x58] sm:$0xff] %v537
    %570 = vst [vmem:[#allocation5 + $0x60] sm:$0xff] %v538
    %571 = vst [vmem:[#allocation5 + $0x68] sm:$0xff] %v539
    %572 = vst [vmem:[#allocation5 + $0x70] sm:$0xff] %v540
    %573 = vst [vmem:[#allocation5 + $0x78] sm:$0xff] %v541
    %574 = vst [vmem:[#allocation5 + $0x80] sm:$0xff] %v542
    %575 = vst [vmem:[#allocation5 + $0x88] sm:$0xff] %v543
    %576 = vst [vmem:[#allocation5 + $0x90] sm:$0xff] %v544
    %577 = vst [vmem:[#allocation5 + $0x98] sm:$0xff] %v545
    %578 = vst [vmem:[#allocation5 + $0xa0] sm:$0xff] %v546
    %579 = vst [vmem:[#allocation5 + $0xa8] sm:$0xff] %v547
    %580 = vst [vmem:[#allocation5 + $0xb0] sm:$0xff] %v548
    %581 = vst [vmem:[#allocation5 + $0xb8] sm:$0xff] %v549
    %582 = vst [vmem:[#allocation5 + $0xc0] sm:$0xff] %v550
    %583 = vst [vmem:[#allocation5 + $0xc8] sm:$0xff] %v551
    %584 = vst [vmem:[#allocation5 + $0xd0] sm:$0xff] %v552
    %585 = vst [vmem:[#allocation5 + $0xd8] sm:$0xff] %v553
    %586 = vst [vmem:[#allocation5 + $0xe0] sm:$0xff] %v554
    %587 = vst [vmem:[#allocation5 + $0xe8] sm:$0xff] %v555
    %588 = vst [vmem:[#allocation5 + $0xf0] sm:$0xff] %v556
    %589 = vst [vmem:[#allocation5 + $0xf8] sm:$0xff] %v557
    // Predicated region
    $region26: #{tpu_custom_call.1} parent=1 // pred_check
      _
    $region27: #{tpu_custom_call.1} parent=1 // pred_check_branch
      %591 = sbr.rel (0) target = $region29
    $region28: #{tpu_custom_call.1} parent=1 // pred_region
      %593 = vsyncadd [#allocation4], 0
      %s594 = sshll.u32 [#allocation5], 4
      %s595 = int_to_ptr.vmem [resolvable:$true] %s594
      %s596 = sshll.u32 %s5, 4
      %s597 = int_to_ptr.hbm [resolvable:$true] %s596
      %602 = dma.vmem_to_hbm [thread:$0]  %s595, 4096, %s597, [#allocation4], 256, 256, 16
    $region29: #{tpu_custom_call.1} parent=1 // pred_fallthru
      _
    // Predicated region
    $region30: #{tpu_custom_call.1} parent=1 // pred_check
      _
    $region31: #{tpu_custom_call.1} parent=1 // pred_check_branch
      %604 = sbr.rel (0) target = $region33
    $region32: #{tpu_custom_call.1} parent=1 // pred_region
      %606 = dma.done [#allocation4], 4096
    $region33: #{tpu_custom_call.1} parent=1 // pred_fallthru
      _
    %607 = vsyncpa [#allocation3], 1
    %608 = vsyncpa [#allocation4], 1

</llo_original>
